<compile_context>
chip_gen: v7x
topology: tpu7x:2x2x1
jax: 0.10.0
libtpu: 0.0.40
codegen_flags: <defaults>
</compile_context>

<pallas_src>
import jax
import jax.numpy as jnp
from jax.experimental import pallas as pl
from jax.experimental.pallas import tpu as pltpu

B = 2          # batch
C_IN = 16      # conv in channels
L_IN = 49      # conv input length
K = 24         # conv kernel size
C_OUT = 20     # conv out channels
L_OUT = L_IN - K + 1          # 26
FLAT = C_OUT * L_OUT          # 520
IN_FLAT = C_IN * L_IN         # 784
IN_AUG = IN_FLAT + 1          # 785 (ones column for the folded b3)

# Packed-slab layout (f32, (96,128)); every piece starts on an 8-row boundary.
SLAB_ROWS, SLAB_COLS = 96, 128
W5_R0, W5_R1, W5_C = 0, 56, 27      # w5^T : rows 0:56,  cols 0:27
W7_R0, W7_R1, W7_C = 56, 83, 10     # w7^T : rows 56:83, cols 0:10
B7_R0, B7_R1 = 88, 89               # b7   : row 88,     cols 0:10


# ----------------------------------------------------------------------------
# Single fused kernel: whole batch, whole network, everything stays in VMEM.
# ----------------------------------------------------------------------------
def fused_kernel(x_ref, wbig_ref, slab_ref, o_ref):
    # x_ref: (B, 785) bf16, wbig_ref: (785, 56) bf16, slab_ref: (96, 128) f32.
    # conv + linear1/2/3 + b3 are pre-folded into wbig (see preprocess_params).
    z = jnp.dot(x_ref[...], wbig_ref[...],
                preferred_element_type=jnp.float32)                    # (B, 56) f32
    z = jnp.tanh(z)

    w5t = slab_ref[W5_R0:W5_R1, 0:W5_C]                                # (56, 27) f32
    z = jnp.tanh(jnp.dot(z, w5t, preferred_element_type=jnp.float32))  # (B, 27)

    w7t = slab_ref[W7_R0:W7_R1, 0:W7_C]                                # (27, 10) f32
    b7 = slab_ref[B7_R0:B7_R1, 0:W7_C]                                 # (1, 10)  f32
    z = jnp.dot(z, w7t, preferred_element_type=jnp.float32) + b7       # (B, 10)

    # log_softmax along last axis
    m = jnp.max(z, axis=-1, keepdims=True)
    lse = m + jnp.log(jnp.sum(jnp.exp(z - m), axis=-1, keepdims=True))
    o_ref[...] = z - lse


def fused_pallas(xf, w_big, slab):
    vmem = pl.BlockSpec(memory_space=pltpu.MemorySpace.VMEM)
    bsz = xf.shape[0]
    flops = 2 * bsz * (IN_AUG * 56 + 56 * 27 + 27 * 10)
    transcendentals = bsz * (56 + 27 + 10 + 1)          # tanh x2 layers, exp, log
    bytes_accessed = (xf.size * 2 + w_big.size * 2 + slab.size * 4 + bsz * 10 * 4)
    return pl.pallas_call(
        fused_kernel,
        out_shape=jax.ShapeDtypeStruct((bsz, 10), jnp.float32),
        in_specs=[vmem, vmem, vmem],
        out_specs=vmem,
        cost_estimate=pl.CostEstimate(
            flops=flops, transcendentals=transcendentals,
            bytes_accessed=bytes_accessed),
    )(xf, w_big, slab)


# ----------------------------------------------------------------------------
# One-time parameter preprocessing (weights only; high precision, then cast).
# ----------------------------------------------------------------------------
def preprocess_params(p):
    hp = "highest"
    f32 = jnp.float32
    wc = p["wc"].astype(f32)                                   # (20, 16, 24)

    # Compose the three bias-free Linears: h @ (W1^T @ W2^T @ W3^T) = h @ w123
    w123 = jnp.dot(jnp.dot(p["w1"].T, p["w2"].T, precision=hp),
                   p["w3"].T, precision=hp)                    # (520, 56)

    # Conv1d (valid, stride 1, no bias) as a dense matrix acting on the
    # flattened (16*49) input:  M[c*49+s, o*26+t] = wc[o, c, s-t] for 0<=s-t<K.
    s_idx = jnp.arange(L_IN)
    t_idx = jnp.arange(L_OUT)
    k = s_idx[:, None] - t_idx[None, :]                        # (49, 26)
    valid = (k >= 0) & (k < K)
    kc = jnp.clip(k, 0, K - 1)
    m = wc[:, :, kc] * valid.astype(f32)[None, None]           # (20, 16, 49, 26)
    m = m.transpose(1, 2, 0, 3).reshape(IN_FLAT, FLAT)         # (784, 520)

    w_big = jnp.dot(m, w123, precision=hp)                     # (784, 56)
    # Fold b3 in as the 785th row (x gets a ones column in forward()).
    w_big = jnp.concatenate([w_big, p["b3"].reshape(1, 56).astype(f32)], axis=0)

    # Pack the remaining tiny operands into one (96,128) f32 slab.
    slab = jnp.zeros((SLAB_ROWS, SLAB_COLS), f32)
    slab = slab.at[W5_R0:W5_R1, 0:W5_C].set(p["w5"].T.astype(f32))   # (56, 27)
    slab = slab.at[W7_R0:W7_R1, 0:W7_C].set(p["w7"].T.astype(f32))   # (27, 10)
    slab = slab.at[B7_R0:B7_R1, 0:W7_C].set(p["b7"].reshape(1, 10).astype(f32))

    return dict(
        w_big=w_big.astype(jnp.bfloat16),   # half the dominant DMA; 1 MXU pass
        slab=slab,
    )


def init_params(key):
    ks = jax.random.split(key, 8)
    s = 0.05
    return {
        "wc":  jax.random.normal(ks[0], (C_OUT, C_IN, K), jnp.float32) * s,
        "w1":  jax.random.normal(ks[1], (63, FLAT), jnp.float32) * s,
        "w2":  jax.random.normal(ks[2], (60, 63), jnp.float32) * s,
        "w3":  jax.random.normal(ks[3], (56, 60), jnp.float32) * s,
        "b3":  jax.random.normal(ks[4], (56,), jnp.float32) * s,
        "w5":  jax.random.normal(ks[5], (27, 56), jnp.float32) * s,
        "w7":  jax.random.normal(ks[6], (10, 27), jnp.float32) * s,
        "b7":  jax.random.normal(ks[7], (10,), jnp.float32) * s,
    }


@jax.jit
def forward(x, prep):
    # x: (B, 1, 28, 28).  The torch module views it as (B, 16, 49); flattening
    # that view row-major is identical to flattening x directly -> (B, 784).
    bsz = x.shape[0]
    xf = x.reshape(bsz, IN_FLAT).astype(jnp.float32)
    xf = jnp.concatenate([xf, jnp.ones((bsz, 1), jnp.float32)], axis=1)  # (B, 785)
    xf = xf.astype(jnp.bfloat16)
    return fused_pallas(xf, prep["w_big"], prep["slab"])


# ----------------------------------------------------------------------------
# Pure-JAX op-by-op reference (mirrors the torch module exactly, f32).
# ----------------------------------------------------------------------------
def reference_forward(x, params):
    hp = "highest"
    x3 = x.reshape(B, C_IN, L_IN).astype(jnp.float32)
    conv = jax.lax.conv_general_dilated(
        x3, params["wc"], window_strides=(1,), padding="VALID",
        dimension_numbers=("NCH", "OIH", "NCH"), precision=hp)
    h = conv.reshape(B, FLAT)
    z = jnp.dot(h, params["w1"].T, precision=hp)
    z = jnp.dot(z, params["w2"].T, precision=hp)
    z = jnp.dot(z, params["w3"].T, precision=hp) + params["b3"]
    z = jnp.tanh(z)
    z = jnp.dot(z, params["w5"].T, precision=hp)
    z = jnp.tanh(z)
    z = jnp.dot(z, params["w7"].T, precision=hp) + params["b7"]
    return jax.nn.log_softmax(z, axis=1)


if __name__ == "__main__":
    key = jax.random.PRNGKey(0)
    k_x, k_p = jax.random.split(key)
    x = jax.random.normal(k_x, (B, 1, 28, 28), jnp.float32)
    params = init_params(k_p)
    prep = preprocess_params(params)          # one-time weight folding/packing

    out = jax.block_until_ready(forward(x, prep))
    ref = reference_forward(x, params)

    assert out.shape == (B, 10)
    # Tolerance accounts for the intentional bf16 cast of the folded weight
    # matrix / activations plus the re-association from folding conv and the
    # three bias-free Linears into one matrix.
    assert jnp.allclose(out, ref, atol=5e-3, rtol=5e-3), "mismatch vs reference"
    # log_softmax rows must sum (in prob space) to ~1
    assert jnp.allclose(jnp.sum(jnp.exp(out), axis=1), 1.0, atol=1e-4)

    print("KERNEL_OK")
</pallas_src>

<mosaic_0001>
module attributes {stable_mosaic.version = 11 : i64} {
  func.func @fused_kernel(%arg0: memref<2x785xbf16, #tpu.memory_space<vmem>>, %arg1: memref<785x56xbf16, #tpu.memory_space<vmem>>, %arg2: memref<96x128xf32, #tpu.memory_space<vmem>>, %arg3: memref<2x10xf32, #tpu.memory_space<vmem>>) attributes {dimension_semantics = [], scalar_prefetch = 0 : i64, scratch_operands = 0 : i64, tpu.core_type = #tpu.core_type<tc>} {
    %c0 = arith.constant 0 : index
    %c0_0 = arith.constant 0 : index
    %0 = vector.load %arg0[%c0, %c0_0] : memref<2x785xbf16, #tpu.memory_space<vmem>>, vector<2x785xbf16>
    %c0_1 = arith.constant 0 : index
    %c0_2 = arith.constant 0 : index
    %1 = vector.load %arg1[%c0_1, %c0_2] : memref<785x56xbf16, #tpu.memory_space<vmem>>, vector<785x56xbf16>
    %cst = arith.constant dense<0.000000e+00> : vector<2x56xf32>
    %2 = tpu.matmul %0, %1, %cst {dimension_numbers = #tpu.dot_dimension_numbers<[1], [0], [0], [1], [0, 0, 1, 1], [], []>} : vector<2x785xbf16>, vector<785x56xbf16>, vector<2x56xf32> -> vector<2x56xf32>
    %3 = math.tanh %2 : vector<2x56xf32>
    %c0_3 = arith.constant 0 : index
    %c0_4 = arith.constant 0 : index
    %4 = vector.load %arg2[%c0_3, %c0_4] : memref<96x128xf32, #tpu.memory_space<vmem>>, vector<56x27xf32>
    %cst_5 = arith.constant dense<0.000000e+00> : vector<2x27xf32>
    %5 = tpu.matmul %3, %4, %cst_5 {dimension_numbers = #tpu.dot_dimension_numbers<[1], [0], [0], [1], [0, 0, 1, 1], [], []>} : vector<2x56xf32>, vector<56x27xf32>, vector<2x27xf32> -> vector<2x27xf32>
    %6 = math.tanh %5 : vector<2x27xf32>
    %c56 = arith.constant 56 : index
    %c0_6 = arith.constant 0 : index
    %7 = vector.load %arg2[%c56, %c0_6] : memref<96x128xf32, #tpu.memory_space<vmem>>, vector<27x10xf32>
    %c88 = arith.constant 88 : index
    %c0_7 = arith.constant 0 : index
    %8 = vector.load %arg2[%c88, %c0_7] : memref<96x128xf32, #tpu.memory_space<vmem>>, vector<1x10xf32>
    %cst_8 = arith.constant dense<0.000000e+00> : vector<2x10xf32>
    %9 = tpu.matmul %6, %7, %cst_8 {dimension_numbers = #tpu.dot_dimension_numbers<[1], [0], [0], [1], [0, 0, 1, 1], [], []>} : vector<2x27xf32>, vector<27x10xf32>, vector<2x10xf32> -> vector<2x10xf32>
    %10 = vector.broadcast %8 : vector<1x10xf32> to vector<2x10xf32>
    %11 = arith.addf %9, %10 : vector<2x10xf32>
    %cst_9 = arith.constant dense<0xFF800000> : vector<2xf32>
    %12 = vector.multi_reduction <maximumf>, %11, %cst_9 [1] : vector<2x10xf32> to vector<2xf32>
    %13 = vector.shape_cast %12 : vector<2xf32> to vector<2x1xf32>
    %14 = vector.broadcast %13 : vector<2x1xf32> to vector<2x10xf32>
    %15 = arith.subf %11, %14 : vector<2x10xf32>
    %16 = math.exp %15 : vector<2x10xf32>
    %cst_10 = arith.constant dense<0.000000e+00> : vector<2xf32>
    %17 = vector.multi_reduction <add>, %16, %cst_10 [1] : vector<2x10xf32> to vector<2xf32>
    %18 = vector.shape_cast %17 : vector<2xf32> to vector<2x1xf32>
    %19 = math.log %18 : vector<2x1xf32>
    %20 = arith.addf %13, %19 : vector<2x1xf32>
    %21 = vector.broadcast %20 : vector<2x1xf32> to vector<2x10xf32>
    %22 = arith.subf %11, %21 : vector<2x10xf32>
    %c0_11 = arith.constant 0 : index
    %c0_12 = arith.constant 0 : index
    %23 = vector.load %arg3[%c0_11, %c0_12] : memref<2x10xf32, #tpu.memory_space<vmem>>, vector<2x10xf32>
    tpu.vector_store %arg3[%c0_11, %c0_12], %22 {strides = array<i32>} : memref<2x10xf32, #tpu.memory_space<vmem>>, vector<2x10xf32>,
    return
  }
}

</mosaic_0001>

<llo_original>
// kernel: forward.1
$region0: #{forward.1}
  #allocation0 [shape = 'u32[]', space=smem, size = 0x4, offset = 0x4, fixed_abs, tag = 'smem constant byte address 0x4 - core index']
  #allocation1 [shape = 'u32[144,128]{1,0:T(1,128)}', space=vmem, size = 0x12000, scoped, tag = 'internal scratch']
  %s0 = inlined_call_operand.vmem [shape: bf16[2,785], index: 0, kind: input, shape index: {}]
  %s1 = inlined_call_operand.vmem [shape: bf16[785,56], index: 1, kind: input, shape index: {}]
  %s2 = inlined_call_operand.vmem [shape: f32[96,128], index: 2, kind: input, shape index: {}]
  %s3 = inlined_call_operand.hbm [shape: f32[2,10], index: 3, kind: output, shape index: {}]
  %s4 = sld [smem:[#allocation0]]
  $region22: #{forward.1} parent=0
    _
  %s6 = ssub.s32 1, %s4
  %s7 = scalar_select 0, %s6, %s4
  $region1: #{forward.1} parent=0
    #allocation2 [shape = 'u8[1024]{0}', space=vmem, size = 0x400, scoped, tag = 'output window, operand 0, single buffered']
    #allocation3 [shape = 's32[1]{0}', space=sflag, size = 0x4, scoped, tag = 'scoped memory for forward.1']
    %8 = vsyncpa [#allocation3], 0
    // Predicated region
    $region2: #{forward.1} parent=1 // pred_check
      _
    $region3: #{forward.1} parent=1 // pred_check_branch
      %10 = sbr.rel (0) target = $region5
    $region4: #{forward.1} parent=1 // pred_region
      _
    $region5: #{forward.1} parent=1 // pred_fallthru
      _
    // Predicated region
    $region6: #{forward.1} parent=1 // pred_check
      _
    $region7: #{forward.1} parent=1 // pred_check_branch
      %12 = sbr.rel (0) target = $region9
    $region8: #{forward.1} parent=1 // pred_region
      _
    $region9: #{forward.1} parent=1 // pred_fallthru
      _
    // Predicated region
    $region10: #{forward.1} parent=1 // pred_check
      _
    $region11: #{forward.1} parent=1 // pred_check_branch
      %14 = sbr.rel (0) target = $region13
    $region12: #{forward.1} parent=1 // pred_region
      _
    $region13: #{forward.1} parent=1 // pred_fallthru
      _
    %v16 = vld [vmem:[%s0] sm:$0x7f]
    %v17 = vld [vmem:[%s1] sm:$0xf]
    %v18 = vld [vmem:[%s1 + $0x4] sm:$0xf]
    %v19 = vld [vmem:[%s1 + $0x8] sm:$0xf]
    %v20 = vld [vmem:[%s1 + $0xc] sm:$0xf]
    %v21 = vld [vmem:[%s1 + $0x10] sm:$0xf]
    %v22 = vld [vmem:[%s1 + $0x14] sm:$0xf]
    %v23 = vld [vmem:[%s1 + $0x18] sm:$0xf]
    %v24 = vld [vmem:[%s1 + $0x1c] sm:$0xf]
    %v25 = vld [vmem:[%s1 + $0x20] sm:$0xf]
    %v26 = vld [vmem:[%s1 + $0x24] sm:$0xf]
    %v27 = vld [vmem:[%s1 + $0x28] sm:$0xf]
    %v28 = vld [vmem:[%s1 + $0x2c] sm:$0xf]
    %v29 = vld [vmem:[%s1 + $0x30] sm:$0xf]
    %v30 = vld [vmem:[%s1 + $0x34] sm:$0xf]
    %v31 = vld [vmem:[%s1 + $0x38] sm:$0xf]
    %v32 = vld [vmem:[%s1 + $0x3c] sm:$0xf]
    %v33 = vld [vmem:[%s1 + $0x40] sm:$0xf]
    %v34 = vld [vmem:[%s1 + $0x44] sm:$0xf]
    %v35 = vld [vmem:[%s1 + $0x48] sm:$0xf]
    %v36 = vld [vmem:[%s1 + $0x4c] sm:$0xf]
    %v37 = vld [vmem:[%s1 + $0x50] sm:$0xf]
    %v38 = vld [vmem:[%s1 + $0x54] sm:$0xf]
    %v39 = vld [vmem:[%s1 + $0x58] sm:$0xf]
    %v40 = vld [vmem:[%s1 + $0x5c] sm:$0xf]
    %v41 = vld [vmem:[%s1 + $0x60] sm:$0xf]
    %v42 = vld [vmem:[%s1 + $0x64] sm:$0xf]
    %v43 = vld [vmem:[%s1 + $0x68] sm:$0xf]
    %v44 = vld [vmem:[%s1 + $0x6c] sm:$0xf]
    %v45 = vld [vmem:[%s1 + $0x70] sm:$0xf]
    %v46 = vld [vmem:[%s1 + $0x74] sm:$0xf]
    %v47 = vld [vmem:[%s1 + $0x78] sm:$0xf]
    %v48 = vld [vmem:[%s1 + $0x7c] sm:$0xf]
    %v49 = vld [vmem:[%s1 + $0x80] sm:$0xf]
    %v50 = vld [vmem:[%s1 + $0x84] sm:$0xf]
    %v51 = vld [vmem:[%s1 + $0x88] sm:$0xf]
    %v52 = vld [vmem:[%s1 + $0x8c] sm:$0xf]
    %v53 = vld [vmem:[%s1 + $0x90] sm:$0xf]
    %v54 = vld [vmem:[%s1 + $0x94] sm:$0xf]
    %v55 = vld [vmem:[%s1 + $0x98] sm:$0xf]
    %v56 = vld [vmem:[%s1 + $0x9c] sm:$0xf]
    %v57 = vld [vmem:[%s1 + $0xa0] sm:$0xf]
    %v58 = vld [vmem:[%s1 + $0xa4] sm:$0xf]
    %v59 = vld [vmem:[%s1 + $0xa8] sm:$0xf]
    %v60 = vld [vmem:[%s1 + $0xac] sm:$0xf]
    %v61 = vld [vmem:[%s1 + $0xb0] sm:$0xf]
    %v62 = vld [vmem:[%s1 + $0xb4] sm:$0xf]
    %v63 = vld [vmem:[%s1 + $0xb8] sm:$0xf]
    %v64 = vld [vmem:[%s1 + $0xbc] sm:$0xf]
    %v65 = vld [vmem:[%s1 + $0xc0] sm:$0xf]
    %v66 = vld [vmem:[%s1 + $0xc4] sm:$0xf]
    %v67 = vld [vmem:[%s1 + $0xc8] sm:$0xf]
    %v68 = vld [vmem:[%s1 + $0xcc] sm:$0xf]
    %v69 = vld [vmem:[%s1 + $0xd0] sm:$0xf]
    %v70 = vld [vmem:[%s1 + $0xd4] sm:$0xf]
    %v71 = vld [vmem:[%s1 + $0xd8] sm:$0xf]
    %v72 = vld [vmem:[%s1 + $0xdc] sm:$0xf]
    %v73 = vld [vmem:[%s1 + $0xe0] sm:$0xf]
    %v74 = vld [vmem:[%s1 + $0xe4] sm:$0xf]
    %v75 = vld [vmem:[%s1 + $0xe8] sm:$0xf]
    %v76 = vld [vmem:[%s1 + $0xec] sm:$0xf]
    %v77 = vld [vmem:[%s1 + $0xf0] sm:$0xf]
    %v78 = vld [vmem:[%s1 + $0xf4] sm:$0xf]
    %v79 = vld [vmem:[%s1 + $0xf8] sm:$0xf]
    %v80 = vld [vmem:[%s1 + $0xfc] sm:$0xf]
    %v81 = vld [vmem:[%s1 + $0x100] sm:$0xf]
    %v82 = vld [vmem:[%s1 + $0x104] sm:$0xf]
    %v83 = vld [vmem:[%s1 + $0x108] sm:$0xf]
    %v84 = vld [vmem:[%s1 + $0x10c] sm:$0xf]
    %v85 = vld [vmem:[%s1 + $0x110] sm:$0xf]
    %v86 = vld [vmem:[%s1 + $0x114] sm:$0xf]
    %v87 = vld [vmem:[%s1 + $0x118] sm:$0xf]
    %v88 = vld [vmem:[%s1 + $0x11c] sm:$0xf]
    %v89 = vld [vmem:[%s1 + $0x120] sm:$0xf]
    %v90 = vld [vmem:[%s1 + $0x124] sm:$0xf]
    %v91 = vld [vmem:[%s1 + $0x128] sm:$0xf]
    %v92 = vld [vmem:[%s1 + $0x12c] sm:$0xf]
    %v93 = vld [vmem:[%s1 + $0x130] sm:$0xf]
    %v94 = vld [vmem:[%s1 + $0x134] sm:$0xf]
    %v95 = vld [vmem:[%s1 + $0x138] sm:$0xf]
    %v96 = vld [vmem:[%s1 + $0x13c] sm:$0xf]
    %v97 = vld [vmem:[%s1 + $0x140] sm:$0xf]
    %v98 = vld [vmem:[%s1 + $0x144] sm:$0xf]
    %v99 = vld [vmem:[%s1 + $0x148] sm:$0xf]
    %v100 = vld [vmem:[%s1 + $0x14c] sm:$0xf]
    %v101 = vld [vmem:[%s1 + $0x150] sm:$0xf]
    %v102 = vld [vmem:[%s1 + $0x154] sm:$0xf]
    %v103 = vld [vmem:[%s1 + $0x158] sm:$0xf]
    %v104 = vld [vmem:[%s1 + $0x15c] sm:$0xf]
    %v105 = vld [vmem:[%s1 + $0x160] sm:$0xf]
    %v106 = vld [vmem:[%s1 + $0x164] sm:$0xf]
    %v107 = vld [vmem:[%s1 + $0x168] sm:$0xf]
    %v108 = vld [vmem:[%s1 + $0x16c] sm:$0xf]
    %v109 = vld [vmem:[%s1 + $0x170] sm:$0xf]
    %v110 = vld [vmem:[%s1 + $0x174] sm:$0xf]
    %v111 = vld [vmem:[%s1 + $0x178] sm:$0xf]
    %v112 = vld [vmem:[%s1 + $0x17c] sm:$0xf]
    %v113 = vld [vmem:[%s1 + $0x180] sm:$0xf]
    %v114 = vld [vmem:[%s1 + $0x184] sm:$0xf]
    %v115 = vld [vmem:[%s1 + $0x188] sm:$0x1]
    %v117 = vcombine.high %v16, %v16
    %v119 = vunpack.c.l.s4 1966171168
    %v120 = vunpack.c.0.s8 %v119
    %v121 = vlaneseq
    %v122 = vshrl.u32 %v121, 7
    %v123 = vsub.s32 %v120, %v122
    %v124 = vrot.slane %v16, %v123
    %v126 = vunpack.c.l.s4 1966171168
    %v127 = vunpack.c.0.s8 %v126
    %v128 = vlaneseq
    %v129 = vshrl.u32 %v128, 7
    %v130 = vsub.s32 %v127, %v129
    %v131 = vrot.slane %v117, %v130
    %v132 = vcombine.high %v124, %v124
    %v133 = vcombine.high %v131, %v131
    %v135 = vunpack.c.l.s4 1966171168
    %v136 = vunpack.c.0.s8 %v135
    %v137 = vlaneseq
    %v138 = vshrl.u32 %v137, 7
    %v139 = vsub.s32 %v136, %v138
    %v140 = vrot.slane %v124, %v139
    %v142 = vunpack.c.l.s4 1966171168
    %v143 = vunpack.c.0.s8 %v142
    %v144 = vlaneseq
    %v145 = vshrl.u32 %v144, 7
    %v146 = vsub.s32 %v143, %v145
    %v147 = vrot.slane %v131, %v146
    %v149 = vunpack.c.l.s4 1966171168
    %v150 = vunpack.c.0.s8 %v149
    %v151 = vlaneseq
    %v152 = vshrl.u32 %v151, 7
    %v153 = vsub.s32 %v150, %v152
    %v154 = vrot.slane %v132, %v153
    %v156 = vunpack.c.l.s4 1966171168
    %v157 = vunpack.c.0.s8 %v156
    %v158 = vlaneseq
    %v159 = vshrl.u32 %v158, 7
    %v160 = vsub.s32 %v157, %v159
    %v161 = vrot.slane %v133, %v160
    %v162 = vcombine.high %v140, %v140
    %v163 = vcombine.high %v147, %v147
    %v164 = vcombine.high %v154, %v154
    %v270 = vunpack.c.l.b16 %v17
    %v271 = vunpack.c.l.b16 %v18
    %v272 = vunpack.c.l.b16 %v19
    %v273 = vunpack.c.l.b16 %v20
    %v274 = vunpack.c.l.b16 %v21
    %v275 = vunpack.c.l.b16 %v22
    %v276 = vunpack.c.l.b16 %v23
    %v277 = vunpack.c.l.b16 %v24
    %v278 = vunpack.c.l.b16 %v25
    %v279 = vunpack.c.l.b16 %v26
    %v280 = vunpack.c.l.b16 %v27
    %v281 = vunpack.c.l.b16 %v28
    %v282 = vunpack.c.l.b16 %v29
    %v283 = vunpack.c.l.b16 %v30
    %v284 = vunpack.c.l.b16 %v31
    %v285 = vunpack.c.l.b16 %v32
    %v286 = vunpack.c.l.b16 %v33
    %v287 = vunpack.c.l.b16 %v34
    %v288 = vunpack.c.l.b16 %v35
    %v289 = vunpack.c.l.b16 %v36
    %v290 = vunpack.c.l.b16 %v37
    %v291 = vunpack.c.l.b16 %v38
    %v292 = vunpack.c.l.b16 %v39
    %v293 = vunpack.c.l.b16 %v40
    %v294 = vunpack.c.l.b16 %v41
    %v295 = vunpack.c.l.b16 %v42
    %v296 = vunpack.c.l.b16 %v43
    %v297 = vunpack.c.l.b16 %v44
    %v298 = vunpack.c.l.b16 %v45
    %v299 = vunpack.c.l.b16 %v46
    %v300 = vunpack.c.l.b16 %v47
    %v301 = vunpack.c.l.b16 %v48
    %v302 = vunpack.c.l.b16 %v49
    %v303 = vunpack.c.l.b16 %v50
    %v304 = vunpack.c.l.b16 %v51
    %v305 = vunpack.c.l.b16 %v52
    %v306 = vunpack.c.l.b16 %v53
    %v307 = vunpack.c.l.b16 %v54
    %v308 = vunpack.c.l.b16 %v55
    %v309 = vunpack.c.l.b16 %v56
    %v310 = vunpack.c.l.b16 %v57
    %v311 = vunpack.c.l.b16 %v58
    %v312 = vunpack.c.l.b16 %v59
    %v313 = vunpack.c.l.b16 %v60
    %v314 = vunpack.c.l.b16 %v61
    %v315 = vunpack.c.l.b16 %v62
    %v316 = vunpack.c.l.b16 %v63
    %v317 = vunpack.c.l.b16 %v64
    %v318 = vunpack.c.l.b16 %v65
    %v319 = vunpack.c.l.b16 %v66
    %v320 = vunpack.c.l.b16 %v67
    %v321 = vunpack.c.l.b16 %v68
    %v322 = vunpack.c.l.b16 %v69
    %v323 = vunpack.c.l.b16 %v70
    %v324 = vunpack.c.l.b16 %v71
    %v325 = vunpack.c.l.b16 %v72
    %v326 = vunpack.c.l.b16 %v73
    %v327 = vunpack.c.l.b16 %v74
    %v328 = vunpack.c.l.b16 %v75
    %v329 = vunpack.c.l.b16 %v76
    %v330 = vunpack.c.l.b16 %v77
    %v331 = vunpack.c.l.b16 %v78
    %v332 = vunpack.c.l.b16 %v79
    %v333 = vunpack.c.l.b16 %v80
    %v334 = vunpack.c.l.b16 %v81
    %v335 = vunpack.c.l.b16 %v82
    %v336 = vunpack.c.l.b16 %v83
    %v337 = vunpack.c.l.b16 %v84
    %v338 = vunpack.c.l.b16 %v85
    %v339 = vunpack.c.l.b16 %v86
    %v340 = vunpack.c.l.b16 %v87
    %v341 = vunpack.c.l.b16 %v88
    %v342 = vunpack.c.l.b16 %v89
    %v343 = vunpack.c.l.b16 %v90
    %v344 = vunpack.c.l.b16 %v91
    %v345 = vunpack.c.l.b16 %v92
    %v346 = vunpack.c.l.b16 %v93
    %v347 = vunpack.c.l.b16 %v94
    %v348 = vunpack.c.l.b16 %v95
    %v349 = vunpack.c.l.b16 %v96
    %v350 = vunpack.c.l.b16 %v97
    %v351 = vunpack.c.l.b16 %v98
    %v352 = vunpack.c.l.b16 %v99
    %v353 = vunpack.c.l.b16 %v100
    %v354 = vunpack.c.l.b16 %v101
    %v355 = vunpack.c.l.b16 %v102
    %v356 = vunpack.c.l.b16 %v103
    %v357 = vunpack.c.l.b16 %v104
    %v358 = vunpack.c.l.b16 %v105
    %v359 = vunpack.c.l.b16 %v106
    %v360 = vunpack.c.l.b16 %v107
    %v361 = vunpack.c.l.b16 %v108
    %v362 = vunpack.c.l.b16 %v109
    %v363 = vunpack.c.l.b16 %v110
    %v364 = vunpack.c.l.b16 %v111
    %v365 = vunpack.c.l.b16 %v112
    %v366 = vunpack.c.l.b16 %v113
    %v367 = vunpack.c.l.b16 %v114
    %v368 = vunpack.c.l.b16 %v115
    %v369 = vpack.c.b16 %v271, %v270
    %v370 = vpack.c.b16 %v273, %v272
    %v371 = vpack.c.b16 %v275, %v274
    %v372 = vpack.c.b16 %v277, %v276
    %v373 = vpack.c.b16 %v279, %v278
    %v374 = vpack.c.b16 %v281, %v280
    %v375 = vpack.c.b16 %v283, %v282
    %v376 = vpack.c.b16 %v285, %v284
    %v377 = vpack.c.b16 %v287, %v286
    %v378 = vpack.c.b16 %v289, %v288
    %v379 = vpack.c.b16 %v291, %v290
    %v380 = vpack.c.b16 %v293, %v292
    %v381 = vpack.c.b16 %v295, %v294
    %v382 = vpack.c.b16 %v297, %v296
    %v383 = vpack.c.b16 %v299, %v298
    %v384 = vpack.c.b16 %v301, %v300
    %v385 = vpack.c.b16 %v303, %v302
    %v386 = vpack.c.b16 %v305, %v304
    %v387 = vpack.c.b16 %v307, %v306
    %v388 = vpack.c.b16 %v309, %v308
    %v389 = vpack.c.b16 %v311, %v310
    %v390 = vpack.c.b16 %v313, %v312
    %v391 = vpack.c.b16 %v315, %v314
    %v392 = vpack.c.b16 %v317, %v316
    %v393 = vpack.c.b16 %v319, %v318
    %v394 = vpack.c.b16 %v321, %v320
    %v395 = vpack.c.b16 %v323, %v322
    %v396 = vpack.c.b16 %v325, %v324
    %v397 = vpack.c.b16 %v327, %v326
    %v398 = vpack.c.b16 %v329, %v328
    %v399 = vpack.c.b16 %v331, %v330
    %v400 = vpack.c.b16 %v333, %v332
    %v401 = vpack.c.b16 %v335, %v334
    %v402 = vpack.c.b16 %v337, %v336
    %v403 = vpack.c.b16 %v339, %v338
    %v404 = vpack.c.b16 %v341, %v340
    %v405 = vpack.c.b16 %v343, %v342
    %v406 = vpack.c.b16 %v345, %v344
    %v407 = vpack.c.b16 %v347, %v346
    %v408 = vpack.c.b16 %v349, %v348
    %v409 = vpack.c.b16 %v351, %v350
    %v410 = vpack.c.b16 %v353, %v352
    %v411 = vpack.c.b16 %v355, %v354
    %v412 = vpack.c.b16 %v357, %v356
    %v413 = vpack.c.b16 %v359, %v358
    %v414 = vpack.c.b16 %v361, %v360
    %v415 = vpack.c.b16 %v363, %v362
    %v416 = vpack.c.b16 %v365, %v364
    %v417 = vpack.c.b16 %v367, %v366
    %v418 = vpack.c.b16 %v368, %v368
    %vm468 = vcmask 138240
    %v470 = vsel %vm468, %v163, 0
    %vm472 = vcmask 1040384
    %v473 = vsel 0, 4294967295, 65535
    %v474 = vsel %vm472, %v473, 0
    %v476 = vand.u32 %v418, %v474
    %478 = vmatprep.subr.bf16.mxu0 0
    %479 = vmatpush1.bf16.msra.mxu0 %v369
    %480 = vmatprep.subr.bf16.mxu0 0
    %481 = vmatpush1.bf16.msra.mxu0 %v370
    %482 = vmatprep.subr.bf16.mxu0 0
    %483 = vmatpush1.bf16.msra.mxu0 %v371
    %484 = vmatprep.subr.bf16.mxu0 0
    %485 = vmatpush1.bf16.msra.mxu0 %v372
    %486 = vmatprep.subr.bf16.mxu0 0
    %487 = vmatpush1.bf16.msra.mxu0 %v373
    %488 = vmatprep.subr.bf16.mxu0 0
    %489 = vmatpush1.bf16.msra.mxu0 %v374
    %490 = vmatprep.subr.bf16.mxu0 0
    %491 = vmatpush1.bf16.msra.mxu0 %v375
    %492 = vmatprep.subr.bf16.mxu0 0
    %493 = vmatpush1.bf16.msra.mxu0 %v376
    %494 = vmatprep.subr.bf16.mxu0 0
    %495 = vmatpush1.bf16.msra.mxu0 %v377
    %496 = vmatprep.subr.bf16.mxu0 0
    %497 = vmatpush1.bf16.msra.mxu0 %v378
    %498 = vmatprep.subr.bf16.mxu0 0
    %499 = vmatpush1.bf16.msra.mxu0 %v379
    %500 = vmatprep.subr.bf16.mxu0 0
    %501 = vmatpush1.bf16.msra.mxu0 %v380
    %502 = vmatprep.subr.bf16.mxu0 0
    %503 = vmatpush1.bf16.msra.mxu0 %v381
    %504 = vmatprep.subr.bf16.mxu0 0
    %505 = vmatpush1.bf16.msra.mxu0 %v382
    %506 = vmatprep.subr.bf16.mxu0 0
    %507 = vmatpush1.bf16.msra.mxu0 %v383
    %508 = vmatprep.subr.bf16.mxu0 0
    %509 = vmatpush1.bf16.msra.mxu0 %v384
    %510 = vmatprep.mubr.bf16.mxu0 %v154
    %511 = vmatmul.mubr.bf16.gmra.mrb[0].mxu0 %v140
    %v512 = vpop.f32.mrb[0].mxu0
    %v513 = vadd.f32 0.0, %v512
    %v514 = vpop.f32.mrb[0].mxu0
    %v515 = vpop.f32.mrb[0].mxu0
    %v516 = vpop.f32.mrb[0].mxu0
    %517 = vdwg.mxu0
    %518 = vmatprep.subr.bf16.mxu0 0
    %519 = vmatpush1.bf16.msra.mxu0 %v385
    %520 = vmatprep.subr.bf16.mxu0 0
    %521 = vmatpush1.bf16.msra.mxu0 %v386
    %522 = vmatprep.subr.bf16.mxu0 0
    %523 = vmatpush1.bf16.msra.mxu0 %v387
    %524 = vmatprep.subr.bf16.mxu0 0
    %525 = vmatpush1.bf16.msra.mxu0 %v388
    %526 = vmatprep.subr.bf16.mxu0 0
    %527 = vmatpush1.bf16.msra.mxu0 %v389
    %528 = vmatprep.subr.bf16.mxu0 0
    %529 = vmatpush1.bf16.msra.mxu0 %v390
    %530 = vmatprep.subr.bf16.mxu0 0
    %531 = vmatpush1.bf16.msra.mxu0 %v391
    %532 = vmatprep.subr.bf16.mxu0 0
    %533 = vmatpush1.bf16.msra.mxu0 %v392
    %534 = vmatprep.subr.bf16.mxu0 0
    %535 = vmatpush1.bf16.msra.mxu0 %v393
    %536 = vmatprep.subr.bf16.mxu0 0
    %537 = vmatpush1.bf16.msra.mxu0 %v394
    %538 = vmatprep.subr.bf16.mxu0 0
    %539 = vmatpush1.bf16.msra.mxu0 %v395
    %540 = vmatprep.subr.bf16.mxu0 0
    %541 = vmatpush1.bf16.msra.mxu0 %v396
    %542 = vmatprep.subr.bf16.mxu0 0
    %543 = vmatpush1.bf16.msra.mxu0 %v397
    %544 = vmatprep.subr.bf16.mxu0 0
    %545 = vmatpush1.bf16.msra.mxu0 %v398
    %546 = vmatprep.subr.bf16.mxu0 0
    %547 = vmatpush1.bf16.msra.mxu0 %v399
    %548 = vmatprep.subr.bf16.mxu0 0
    %549 = vmatpush1.bf16.msra.mxu0 %v400
    %550 = vmatprep.mubr.bf16.mxu0 %v164
    %551 = vmatmul.mubr.bf16.gmra.mrb[0].mxu0 %v162
    %v552 = vpop.f32.mrb[0].mxu0
    %v553 = vadd.f32 %v513, %v552
    %v554 = vpop.f32.mrb[0].mxu0
    %v555 = vpop.f32.mrb[0].mxu0
    %v556 = vpop.f32.mrb[0].mxu0
    %557 = vdwg.mxu0
    %558 = vmatprep.subr.bf16.mxu0 0
    %559 = vmatpush1.bf16.msra.mxu0 %v401
    %560 = vmatprep.subr.bf16.mxu0 0
    %561 = vmatpush1.bf16.msra.mxu0 %v402
    %562 = vmatprep.subr.bf16.mxu0 0
    %563 = vmatpush1.bf16.msra.mxu0 %v403
    %564 = vmatprep.subr.bf16.mxu0 0
    %565 = vmatpush1.bf16.msra.mxu0 %v404
    %566 = vmatprep.subr.bf16.mxu0 0
    %567 = vmatpush1.bf16.msra.mxu0 %v405
    %568 = vmatprep.subr.bf16.mxu0 0
    %569 = vmatpush1.bf16.msra.mxu0 %v406
    %570 = vmatprep.subr.bf16.mxu0 0
    %571 = vmatpush1.bf16.msra.mxu0 %v407
    %572 = vmatprep.subr.bf16.mxu0 0
    %573 = vmatpush1.bf16.msra.mxu0 %v408
    %574 = vmatprep.subr.bf16.mxu0 0
    %575 = vmatpush1.bf16.msra.mxu0 %v409
    %576 = vmatprep.subr.bf16.mxu0 0
    %577 = vmatpush1.bf16.msra.mxu0 %v410
    %578 = vmatprep.subr.bf16.mxu0 0
    %579 = vmatpush1.bf16.msra.mxu0 %v411
    %580 = vmatprep.subr.bf16.mxu0 0
    %581 = vmatpush1.bf16.msra.mxu0 %v412
    %582 = vmatprep.subr.bf16.mxu0 0
    %583 = vmatpush1.bf16.msra.mxu0 %v413
    %584 = vmatprep.subr.bf16.mxu0 0
    %585 = vmatpush1.bf16.msra.mxu0 %v414
    %586 = vmatprep.subr.bf16.mxu0 0
    %587 = vmatpush1.bf16.msra.mxu0 %v415
    %588 = vmatprep.subr.bf16.mxu0 0
    %589 = vmatpush1.bf16.msra.mxu0 %v416
    %590 = vmatprep.mubr.bf16.mxu0 %v161
    %591 = vmatmul.mubr.bf16.gmra.mrb[0].mxu0 %v147
    %v592 = vpop.f32.mrb[0].mxu0
    %v593 = vadd.f32 %v553, %v592
    %v594 = vpop.f32.mrb[0].mxu0
    %v595 = vpop.f32.mrb[0].mxu0
    %v596 = vpop.f32.mrb[0].mxu0
    %597 = vdwg.mxu0
    %598 = vmatprep.subr.bf16.mxu0 0
    %599 = vmatpush1.bf16.msra.mxu0 %v417
    %600 = vmatprep.subr.bf16.mxu0 0
    %601 = vmatpush1.bf16.msra.mxu0 %v476
    %602 = vmatprep.subr.bf16.mxu0 0
    %603 = vmatpush1.bf16.msra.mxu0 0
    %604 = vmatprep.subr.bf16.mxu0 0
    %605 = vmatpush1.bf16.msra.mxu0 0
    %606 = vmatprep.subr.bf16.mxu0 0
    %607 = vmatpush1.bf16.msra.mxu0 0
    %608 = vmatprep.subr.bf16.mxu0 0
    %609 = vmatpush1.bf16.msra.mxu0 0
    %610 = vmatprep.subr.bf16.mxu0 0
    %611 = vmatpush1.bf16.msra.mxu0 0
    %612 = vmatprep.subr.bf16.mxu0 0
    %613 = vmatpush1.bf16.msra.mxu0 0
    %614 = vmatprep.subr.bf16.mxu0 0
    %615 = vmatpush1.bf16.msra.mxu0 0
    %616 = vmatprep.subr.bf16.mxu0 0
    %617 = vmatpush1.bf16.msra.mxu0 0
    %618 = vmatprep.subr.bf16.mxu0 0
    %619 = vmatpush1.bf16.msra.mxu0 0
    %620 = vmatprep.subr.bf16.mxu0 0
    %621 = vmatpush1.bf16.msra.mxu0 0
    %622 = vmatprep.subr.bf16.mxu0 0
    %623 = vmatpush1.bf16.msra.mxu0 0
    %624 = vmatprep.subr.bf16.mxu0 0
    %625 = vmatpush1.bf16.msra.mxu0 0
    %626 = vmatprep.subr.bf16.mxu0 0
    %627 = vmatpush1.bf16.msra.mxu0 0
    %628 = vmatprep.subr.bf16.mxu0 0
    %629 = vmatpush1.bf16.msra.mxu0 0
    %630 = vmatprep.mubr.bf16.mxu0 0
    %631 = vmatmul.mubr.bf16.gmra.mrb[0].mxu0 %v470
    %v632 = vpop.f32.mrb[0].mxu0
    %v633 = vadd.f32 %v593, %v632
    %v634 = vpop.f32.mrb[0].mxu0
    %v635 = vpop.f32.mrb[0].mxu0
    %v636 = vpop.f32.mrb[0].mxu0
    %637 = vdwg.mxu0
    %v638 = vtanh.pop %v633
    %v639 = vld [vmem:[%s2] sm:$0xff]
    %v640 = vld [vmem:[%s2 + $0x8] sm:$0xff]
    %v641 = vld [vmem:[%s2 + $0x10] sm:$0xff]
    %v642 = vld [vmem:[%s2 + $0x18] sm:$0xff]
    %v643 = vld [vmem:[%s2 + $0x20] sm:$0xff]
    %v644 = vld [vmem:[%s2 + $0x28] sm:$0xff]
    %v645 = vld [vmem:[%s2 + $0x30] sm:$0xff]
    %vm646 = vcmask 457728
    %v648 = vsel %vm646, %v638, 0
    %650 = vmatprep.subr.mxu0 0.0
    %651 = vmatpush1.msra.mxu0 %v639
    %652 = vmatprep.subr.mxu0 0.0
    %653 = vmatpush1.msra.mxu0 %v640
    %654 = vmatprep.subr.mxu0 0.0
    %655 = vmatpush1.msra.mxu0 %v641
    %656 = vmatprep.subr.mxu0 0.0
    %657 = vmatpush1.msra.mxu0 %v642
    %658 = vmatprep.subr.mxu0 0.0
    %659 = vmatpush1.msra.mxu0 %v643
    %660 = vmatprep.subr.mxu0 0.0
    %661 = vmatpush1.msra.mxu0 %v644
    %662 = vmatprep.subr.mxu0 0.0
    %663 = vmatpush1.msra.mxu0 %v645
    %664 = vmatprep.subr.mxu0 0.0
    %665 = vmatpush1.msra.mxu0 0.0
    %666 = vmatprep.subr.mxu0 0.0
    %667 = vmatpush1.msra.mxu0 0.0
    %668 = vmatprep.subr.mxu0 0.0
    %669 = vmatpush1.msra.mxu0 0.0
    %670 = vmatprep.subr.mxu0 0.0
    %671 = vmatpush1.msra.mxu0 0.0
    %672 = vmatprep.subr.mxu0 0.0
    %673 = vmatpush1.msra.mxu0 0.0
    %674 = vmatprep.subr.mxu0 0.0
    %675 = vmatpush1.msra.mxu0 0.0
    %676 = vmatprep.subr.mxu0 0.0
    %677 = vmatpush1.msra.mxu0 0.0
    %678 = vmatprep.subr.mxu0 0.0
    %679 = vmatpush1.msra.mxu0 0.0
    %680 = vmatprep.subr.mxu0 0.0
    %681 = vmatpush1.msra.mxu0 0.0
    %682 = vmatprep.subr.mxu0 0.0
    %683 = vmatpush1.msra.mxu0 0.0
    %684 = vmatprep.subr.mxu0 0.0
    %685 = vmatpush1.msra.mxu0 0.0
    %686 = vmatprep.subr.mxu0 0.0
    %687 = vmatpush1.msra.mxu0 0.0
    %688 = vmatprep.subr.mxu0 0.0
    %689 = vmatpush1.msra.mxu0 0.0
    %690 = vmatprep.subr.mxu0 0.0
    %691 = vmatpush1.msra.mxu0 0.0
    %692 = vmatprep.subr.mxu0 0.0
    %693 = vmatpush1.msra.mxu0 0.0
    %694 = vmatprep.subr.mxu0 0.0
    %695 = vmatpush1.msra.mxu0 0.0
    %696 = vmatprep.subr.mxu0 0.0
    %697 = vmatpush1.msra.mxu0 0.0
    %698 = vmatprep.subr.mxu0 0.0
    %699 = vmatpush1.msra.mxu0 0.0
    %700 = vmatprep.subr.mxu0 0.0
    %701 = vmatpush1.msra.mxu0 0.0
    %702 = vmatprep.subr.mxu0 0.0
    %703 = vmatpush1.msra.mxu0 0.0
    %704 = vmatprep.subr.mxu0 0.0
    %705 = vmatpush1.msra.mxu0 0.0
    %706 = vmatprep.subr.mxu0 0.0
    %707 = vmatpush1.msra.mxu0 0.0
    %708 = vmatprep.subr.mxu0 0.0
    %709 = vmatpush1.msra.mxu0 0.0
    %710 = vmatprep.subr.mxu0 0.0
    %711 = vmatpush1.msra.mxu0 0.0
    %712 = vmatprep.subr.mxu0 0.0
    %713 = vmatpush1.msra.mxu0 0.0
    %714 = vmatprep.mubr.f32.mxu0 0.0
    %715 = vmatmul.mubr.f32.gmra.mrb[0].mxu0 %v648
    %v716 = vpop.f32.mrb[0].mxu0
    %v717 = vadd.f32 0.0, %v716
    %v718 = vpop.f32.mrb[0].mxu0
    %719 = vdwg.mxu0
    %v720 = vtanh.pop %v717
    %v721 = vld [vmem:[%s2 + $0x38] sm:$0xff]
    %v722 = vld [vmem:[%s2 + $0x40] sm:$0xff]
    %v723 = vld [vmem:[%s2 + $0x48] sm:$0xff]
    %v724 = vld [vmem:[%s2 + $0x50] sm:$0x7]
    %v725 = vld [vmem:[%s2 + $0x58] sm:$0x1]
    %v726 = vlaneseq
    %v727 = vshrl.u32 %v726, 7
    %v728 = vsub.s32 0, %v727
    %v729 = vrot.slane %v725, %v728
    %vm730 = vcmask 220160
    %v732 = vsel %vm730, %v720, 0
    %vm734 = vcmask 1042432
    %v736 = vsel %vm734, %v724, 0
    %738 = vmatprep.subr.mxu0 0.0
    %739 = vmatpush1.msra.mxu0 %v721
    %740 = vmatprep.subr.mxu0 0.0
    %741 = vmatpush1.msra.mxu0 %v722
    %742 = vmatprep.subr.mxu0 0.0
    %743 = vmatpush1.msra.mxu0 %v723
    %744 = vmatprep.subr.mxu0 0.0
    %745 = vmatpush1.msra.mxu0 %v736
    %746 = vmatprep.subr.mxu0 0.0
    %747 = vmatpush1.msra.mxu0 0.0
    %748 = vmatprep.subr.mxu0 0.0
    %749 = vmatpush1.msra.mxu0 0.0
    %750 = vmatprep.subr.mxu0 0.0
    %751 = vmatpush1.msra.mxu0 0.0
    %752 = vmatprep.subr.mxu0 0.0
    %753 = vmatpush1.msra.mxu0 0.0
    %754 = vmatprep.subr.mxu0 0.0
    %755 = vmatpush1.msra.mxu0 0.0
    %756 = vmatprep.subr.mxu0 0.0
    %757 = vmatpush1.msra.mxu0 0.0
    %758 = vmatprep.subr.mxu0 0.0
    %759 = vmatpush1.msra.mxu0 0.0
    %760 = vmatprep.subr.mxu0 0.0
    %761 = vmatpush1.msra.mxu0 0.0
    %762 = vmatprep.subr.mxu0 0.0
    %763 = vmatpush1.msra.mxu0 0.0
    %764 = vmatprep.subr.mxu0 0.0
    %765 = vmatpush1.msra.mxu0 0.0
    %766 = vmatprep.subr.mxu0 0.0
    %767 = vmatpush1.msra.mxu0 0.0
    %768 = vmatprep.subr.mxu0 0.0
    %769 = vmatpush1.msra.mxu0 0.0
    %770 = vmatprep.subr.mxu0 0.0
    %771 = vmatpush1.msra.mxu0 0.0
    %772 = vmatprep.subr.mxu0 0.0
    %773 = vmatpush1.msra.mxu0 0.0
    %774 = vmatprep.subr.mxu0 0.0
    %775 = vmatpush1.msra.mxu0 0.0
    %776 = vmatprep.subr.mxu0 0.0
    %777 = vmatpush1.msra.mxu0 0.0
    %778 = vmatprep.subr.mxu0 0.0
    %779 = vmatpush1.msra.mxu0 0.0
    %780 = vmatprep.subr.mxu0 0.0
    %781 = vmatpush1.msra.mxu0 0.0
    %782 = vmatprep.subr.mxu0 0.0
    %783 = vmatpush1.msra.mxu0 0.0
    %784 = vmatprep.subr.mxu0 0.0
    %785 = vmatpush1.msra.mxu0 0.0
    %786 = vmatprep.subr.mxu0 0.0
    %787 = vmatpush1.msra.mxu0 0.0
    %788 = vmatprep.subr.mxu0 0.0
    %789 = vmatpush1.msra.mxu0 0.0
    %790 = vmatprep.subr.mxu0 0.0
    %791 = vmatpush1.msra.mxu0 0.0
    %792 = vmatprep.subr.mxu0 0.0
    %793 = vmatpush1.msra.mxu0 0.0
    %794 = vmatprep.subr.mxu0 0.0
    %795 = vmatpush1.msra.mxu0 0.0
    %796 = vmatprep.subr.mxu0 0.0
    %797 = vmatpush1.msra.mxu0 0.0
    %798 = vmatprep.subr.mxu0 0.0
    %799 = vmatpush1.msra.mxu0 0.0
    %800 = vmatprep.subr.mxu0 0.0
    %801 = vmatpush1.msra.mxu0 0.0
    %802 = vmatprep.mubr.f32.mxu0 0.0
    %803 = vmatmul.mubr.f32.gmra.mrb[0].mxu0 %v732
    %v804 = vpop.f32.mrb[0].mxu0
    %v805 = vadd.f32 %v729, %v804
    %v806 = vpop.f32.mrb[0].mxu0
    %807 = vdwg.mxu0
    %vm808 = vcmask 74752
    %v809 = vsel %vm808, %v805, -inf
    %810 = vmax.xlane.f32.xlu0 %v809
    %v811 = vpop.xlane.xlu0 %810
    %v812 = vsub.f32 %v805, %v811
    %v813 = vmul.f32 %v812, 1.442695
    %v814 = vpow.pop %v813
    %v815 = vsel %vm808, %v814, 0.0
    %816 = vadd.xlane.f32.xlu0 %v815
    %v817 = vpop.xlane.xlu0 %816
    %v818 = vlog2.pop %v817
    %v819 = vmul.f32 %v818, 0.6931472
    %v820 = vadd.f32 %v811, %v819
    %v821 = vsub.f32 %v805, %v820
    %822 = vst.msk [vmem:[#allocation2] sm:$0x3] %vm808, %v821
    // Predicated region
    $region14: #{forward.1} parent=1 // pred_check
      _
    $region15: #{forward.1} parent=1 // pred_check_branch
      %824 = sbr.rel (0) target = $region17
    $region16: #{forward.1} parent=1 // pred_region
      %s826 = ssub.s32 32, 32
      %827 = vsyncadd [#allocation3], %s826
      %s829 = sshll.u32 [#allocation2], 4
      %s830 = int_to_ptr.vmem [resolvable:$true] %s829
      %832 = dma.vmem_to_hbm [thread:$0]  %s830, 32, %s3, [#allocation3]
    $region17: #{forward.1} parent=1 // pred_fallthru
      _
    // Predicated region
    $region18: #{forward.1} parent=1 // pred_check
      _
    $region19: #{forward.1} parent=1 // pred_check_branch
      %834 = sbr.rel (0) target = $region21
    $region20: #{forward.1} parent=1 // pred_region
      %835 = dma.done [#allocation3], 32
    $region21: #{forward.1} parent=1 // pred_fallthru
      _
    %836 = vsyncpa [#allocation3], 1

</llo_original>
